<compile_context>
chip_gen: v7x
topology: tpu7x:2x2x1
jax: 0.10.0
libtpu: 0.0.40
codegen_flags: <defaults>
</compile_context>

<pallas_src>
import functools

import jax
import jax.numpy as jnp
from jax.experimental import pallas as pl
from jax.experimental.pallas import tpu as pltpu

_LANE = 128
_NEG_BIAS = -1e30                       # padded-class bias -> exp() == 0


def _round_up(x, m):
    return ((x + m - 1) // m) * m


def _cdiv(a, b):
    return -(-a // b)


def _row_granularity(compute_dtype):
    # Sublane packing: f32 -> 8 rows/vreg, bf16 -> 16, int8/fp8 -> 32.
    itemsize = jnp.dtype(compute_dtype).itemsize
    if itemsize >= 4:
        return 8
    if itemsize == 2:
        return 16
    return 32


def _tpu_vmem_info():
    """Returns (per-core VMEM bytes, is_multi_tensorcore_chip)."""
    vmem = 128 * 1024 * 1024
    multi_core = False
    try:
        kind = jax.devices()[0].device_kind.lower()
        multi_core = "v7" in kind
    except Exception:
        pass
    try:
        vmem = int(pltpu.get_tpu_info().vmem_capacity_bytes)
    except Exception:
        if multi_core:
            vmem = 64 * 1024 * 1024
    if multi_core:
        # v7x: 64 MiB per TensorCore even if the query reports per-chip.
        vmem = min(vmem, 64 * 1024 * 1024)
    return vmem, multi_core


def _choose_tile_n(n, per_row_bytes, resident_bytes, budget, row_gran,
                   multi_core):
    """Largest batch tile (multiple of row_gran) fitting the VMEM budget.

    On multi-core chips (v7x) the parallel batch axis is sharded across the
    two TensorCores, so prefer >= 2 grid steps with an even step count.  On
    single-core chips the grid is a serial loop: just take the biggest tile.
    """
    n_eff = _round_up(max(n, 1), row_gran)
    candidates = [t for t in (2048, 1024, 512, 256, 128, 64, 32, 16, 8)
                  if t >= row_gran and t % row_gran == 0]
    fit = row_gran
    for t in candidates:
        if t * per_row_bytes + resident_bytes <= budget:
            fit = t
            break
    tile = max(_round_up(min(fit, n_eff), row_gran), row_gran)
    if not multi_core or n_eff <= row_gran:
        return tile
    # v7x: at least two steps so the second TensorCore gets work.
    half = _round_up(_cdiv(n_eff, 2), row_gran)
    tile = min(tile, half)
    steps = _cdiv(n_eff, tile)
    if steps > 1 and steps % 2 == 1:
        alt = _round_up(_cdiv(n_eff, steps + 1), row_gran)
        if alt >= row_gran and _cdiv(n_eff, alt) % 2 == 0:
            tile = alt
    return tile


# ----------------------------------------------------------------------------
# Kernels
# ----------------------------------------------------------------------------

def _logreg_kernel(x_ref, w_ref, b_ref, o_ref, *, approx_reciprocal):
    # MXU matmul with f32 accumulation; bias add + stable softmax on VPU/EUP.
    scores = jnp.dot(x_ref[...], w_ref[...],
                     preferred_element_type=jnp.float32) + b_ref[...]
    m = jnp.max(scores, axis=1, keepdims=True)
    e = jnp.exp(scores - m)
    inv = pl.reciprocal(jnp.sum(e, axis=1, keepdims=True),
                        approx=approx_reciprocal)
    o_ref[...] = (e * inv).astype(o_ref.dtype)


def _logreg_kernel_ktiled_inplace(x_ref, w_ref, b_ref, o_ref, *,
                                  approx_reciprocal):
    # Contraction axis is the last grid dim ("arbitrary").  The output block's
    # index_map is constant in k, so it stays resident in VMEM across k steps:
    # accumulate partial scores directly into it (f32 output), then apply the
    # bias + stable softmax on the final K step.
    k = pl.program_id(1)

    @pl.when(k == 0)
    def _():
        o_ref[...] = jnp.zeros_like(o_ref)

    o_ref[...] += jnp.dot(x_ref[...], w_ref[...],
                          preferred_element_type=jnp.float32)

    @pl.when(k == pl.num_programs(1) - 1)
    def _():
        scores = o_ref[...] + b_ref[...]
        m = jnp.max(scores, axis=1, keepdims=True)
        e = jnp.exp(scores - m)
        inv = pl.reciprocal(jnp.sum(e, axis=1, keepdims=True),
                            approx=approx_reciprocal)
        o_ref[...] = (e * inv).astype(o_ref.dtype)


def _logreg_kernel_ktiled_scratch(x_ref, w_ref, b_ref, o_ref, acc_ref, *,
                                  approx_reciprocal):
    # Same as above but with a separate f32 accumulator (output narrower than
    # f32, e.g. bf16 outputs).
    k = pl.program_id(1)

    @pl.when(k == 0)
    def _():
        acc_ref[...] = jnp.zeros_like(acc_ref)

    acc_ref[...] += jnp.dot(x_ref[...], w_ref[...],
                            preferred_element_type=jnp.float32)

    @pl.when(k == pl.num_programs(1) - 1)
    def _():
        scores = acc_ref[...] + b_ref[...]
        m = jnp.max(scores, axis=1, keepdims=True)
        e = jnp.exp(scores - m)
        inv = pl.reciprocal(jnp.sum(e, axis=1, keepdims=True),
                            approx=approx_reciprocal)
        o_ref[...] = (e * inv).astype(o_ref.dtype)


# ----------------------------------------------------------------------------
# pallas_call builders
# ----------------------------------------------------------------------------

def _run_simple(x_c, w_p, b_p, n, d, c_pad, out_dtype, compute_dtype, tile_n,
                budget, vmem_limit, multi_core, approx_reciprocal,
                single_buffer_w):
    itemsize = jnp.dtype(compute_dtype).itemsize
    out_itemsize = jnp.dtype(out_dtype).itemsize
    row_gran = _row_granularity(compute_dtype)

    w_bufs = 1 if single_buffer_w else 2
    resident = w_bufs * (d * c_pad * itemsize + c_pad * 4)   # W + bias buffers
    per_row = 2 * d * itemsize + 2 * c_pad * out_itemsize    # X + out (2 bufs)
    if tile_n is None:
        tile_n = _choose_tile_n(n, per_row, resident, budget, row_gran,
                                multi_core)
    grid = (_cdiv(n, tile_n),)

    const_kwargs = dict(pipeline_mode=pl.Buffered(1)) if single_buffer_w else {}

    return pl.pallas_call(
        functools.partial(_logreg_kernel, approx_reciprocal=approx_reciprocal),
        out_shape=jax.ShapeDtypeStruct((n, c_pad), out_dtype),
        grid_spec=pltpu.PrefetchScalarGridSpec(
            num_scalar_prefetch=0,
            grid=grid,
            in_specs=[
                pl.BlockSpec((tile_n, d), lambda i: (i, 0)),          # X tile
                pl.BlockSpec((d, c_pad), lambda i: (0, 0),
                             **const_kwargs),                         # resident W
                pl.BlockSpec((1, c_pad), lambda i: (0, 0),
                             **const_kwargs),                         # resident b
            ],
            out_specs=pl.BlockSpec((tile_n, c_pad), lambda i: (i, 0)),
        ),
        compiler_params=pltpu.CompilerParams(
            dimension_semantics=("parallel",),
            vmem_limit_bytes=vmem_limit),
        cost_estimate=pl.CostEstimate(
            flops=2 * n * d * c_pad,
            transcendentals=n * c_pad,
            bytes_accessed=(n * d + d * c_pad) * itemsize
                           + c_pad * 4
                           + n * c_pad * out_itemsize),
    )(x_c, w_p, b_p)


def _run_ktiled(x_c, w_p, b_p, n, d, c_pad, out_dtype, compute_dtype, tile_n,
                tile_k, budget, vmem_limit, multi_core, approx_reciprocal,
                single_buffer_b):
    itemsize = jnp.dtype(compute_dtype).itemsize
    out_itemsize = jnp.dtype(out_dtype).itemsize
    row_gran = _row_granularity(compute_dtype)

    if tile_k is None:
        tile_k = min(512, _round_up(d, _LANE))
    tile_k = _round_up(tile_k, _LANE)
    d_pad = _round_up(d, tile_k)

    inplace = jnp.dtype(out_dtype) == jnp.dtype(jnp.float32)
    # Per batch row: double-buffered X slab + double-buffered out (+ f32 acc).
    per_row = 2 * tile_k * itemsize + 2 * c_pad * out_itemsize
    if not inplace:
        per_row += c_pad * 4
    b_bufs = 1 if single_buffer_b else 2
    resident = 2 * tile_k * c_pad * itemsize + b_bufs * c_pad * 4
    if tile_n is None:
        tile_n = _choose_tile_n(n, per_row, resident, budget, row_gran,
                                multi_core)

    # The contraction axis must be zero-padded (OOB garbage would pollute the
    # accumulator); batch stays unpadded (OOB rows are dropped at writeback).
    x_p = jnp.pad(x_c, ((0, 0), (0, d_pad - d))) if d_pad != d else x_c
    w_kp = jnp.pad(w_p, ((0, d_pad - d), (0, 0))) if d_pad != d else w_p
    n_steps = _cdiv(n, tile_n)
    grid = (n_steps, d_pad // tile_k)

    b_kwargs = dict(pipeline_mode=pl.Buffered(1)) if single_buffer_b else {}
    if inplace:
        kernel = functools.partial(_logreg_kernel_ktiled_inplace,
                                   approx_reciprocal=approx_reciprocal)
        scratch = []
    else:
        kernel = functools.partial(_logreg_kernel_ktiled_scratch,
                                   approx_reciprocal=approx_reciprocal)
        scratch = [pltpu.VMEM((tile_n, c_pad), jnp.float32)]

    return pl.pallas_call(
        kernel,
        out_shape=jax.ShapeDtypeStruct((n, c_pad), out_dtype),
        grid_spec=pltpu.PrefetchScalarGridSpec(
            num_scalar_prefetch=0,
            grid=grid,
            in_specs=[
                pl.BlockSpec((tile_n, tile_k), lambda i, k: (i, k)),
                pl.BlockSpec((tile_k, c_pad), lambda i, k: (k, 0)),
                pl.BlockSpec((1, c_pad), lambda i, k: (0, 0), **b_kwargs),
            ],
            out_specs=pl.BlockSpec((tile_n, c_pad), lambda i, k: (i, 0)),
            scratch_shapes=scratch,
        ),
        compiler_params=pltpu.CompilerParams(
            dimension_semantics=("parallel", "arbitrary"),
            vmem_limit_bytes=vmem_limit),
        cost_estimate=pl.CostEstimate(
            flops=2 * n * d_pad * c_pad,
            transcendentals=n * c_pad,
            # W's index_map depends on k -> it is re-streamed per batch tile.
            bytes_accessed=n * d_pad * itemsize
                           + n_steps * d_pad * c_pad * itemsize
                           + c_pad * 4
                           + n * c_pad * out_itemsize),
    )(x_p, w_kp, b_p)


# ----------------------------------------------------------------------------
# Public wrapper
# ----------------------------------------------------------------------------

def pt_logreg_forward(x, w, b, *, tile_n=None, tile_k=None,
                      force_k_tiling=False, approx_reciprocal=False,
                      cast_inputs_to_bf16=False):
    """softmax(x @ w + b, axis=1) via a Pallas TPU kernel.

    x: (N, D), w: (D, C), b: (1, C) or (C,).  Returns (N, C) probabilities in
    x.dtype.  Batch axis tiled (parallel); W resident in VMEM by default, with
    a K-tiled (contraction-split) fallback when W + tiles overflow the budget.

    cast_inputs_to_bf16=True is strongly recommended for bandwidth-bound
    deployments (halves X/W HBM traffic; MXU takes bf16 natively) but is kept
    opt-in so default numerics match the f32 PyTorch reference.
    """
    n, d = x.shape
    d_w, c = w.shape
    assert d_w == d, "W feature dim must match X"
    b = jnp.reshape(b, (1, c))

    out_dtype = x.dtype
    compute_dtype = jnp.bfloat16 if cast_inputs_to_bf16 else x.dtype
    itemsize = jnp.dtype(compute_dtype).itemsize
    out_itemsize = jnp.dtype(out_dtype).itemsize
    row_gran = _row_granularity(compute_dtype)

    vmem_bytes, multi_core = _tpu_vmem_info()
    budget = vmem_bytes // 2               # kernel-managed tile/buffer budget
    vmem_limit = (vmem_bytes * 3) // 4     # scoped limit; leaves 25% headroom

    # Lane-dense class axis: pad C to a multiple of 128 so output stores are
    # unmasked and MXU columns are filled.  Padded classes use bias -1e30 so
    # exp() -> 0 and the softmax over real classes is unchanged.
    c_pad = _round_up(max(c, _LANE), _LANE)
    w_p = w.astype(compute_dtype)
    b_p = b.astype(jnp.float32)
    if c_pad != c:
        w_p = jnp.pad(w_p, ((0, 0), (0, c_pad - c)))
        b_p = jnp.pad(b_p, ((0, 0), (0, c_pad - c)), constant_values=_NEG_BIAS)
    x_c = x.astype(compute_dtype)

    # Does the resident-W path fit even at the smallest batch tile?  Counts
    # single-buffered W/b (Buffered(1)) + double-buffered X and output tiles.
    resident_w = d * c_pad * itemsize + c_pad * 4
    per_row_simple = 2 * d * itemsize + 2 * c_pad * out_itemsize
    simple_fits = row_gran * per_row_simple + resident_w <= budget
    use_k_tiling = force_k_tiling or not simple_fits

    if not use_k_tiling:
        try:
            out = _run_simple(x_c, w_p, b_p, n, d, c_pad, out_dtype,
                              compute_dtype, tile_n, budget, vmem_limit,
                              multi_core, approx_reciprocal,
                              single_buffer_w=True)
        except Exception:
            out = _run_simple(x_c, w_p, b_p, n, d, c_pad, out_dtype,
                              compute_dtype, tile_n, budget, vmem_limit,
                              multi_core, approx_reciprocal,
                              single_buffer_w=False)
    else:
        try:
            out = _run_ktiled(x_c, w_p, b_p, n, d, c_pad, out_dtype,
                              compute_dtype, tile_n, tile_k, budget,
                              vmem_limit, multi_core, approx_reciprocal,
                              single_buffer_b=True)
        except Exception:
            out = _run_ktiled(x_c, w_p, b_p, n, d, c_pad, out_dtype,
                              compute_dtype, tile_n, tile_k, budget,
                              vmem_limit, multi_core, approx_reciprocal,
                              single_buffer_b=False)

    # TODO(synk): add a class-axis (C) tiled path (two-pass / online softmax)
    # for very large C where a full (tile_n, c_pad) row overflows VMEM.
    return out if c == c_pad else out[:, :c]


if __name__ == "__main__":
    # Shapes implied by the module: X is (N, D), W is (D, C), b is (1, C).
    N, D, C = 8, 32, 16
    key = jax.random.PRNGKey(0)
    kx, kw, kb = jax.random.split(key, 3)
    x = jax.random.normal(kx, (N, D), dtype=jnp.float32)
    W = jax.random.normal(kw, (D, C), dtype=jnp.float32)
    b = jax.random.normal(kb, (1, C), dtype=jnp.float32)

    probs = jax.block_until_ready(pt_logreg_forward(x, W, b))
    ref = jax.nn.softmax(x @ W + b, axis=1)
    assert probs.shape == (N, C)
    assert jnp.allclose(probs, ref, atol=1e-5, rtol=1e-5)
    assert jnp.allclose(jnp.sum(probs, axis=1), 1.0, atol=1e-5)

    # bf16-input path (recommended for the HBM-bound common case).
    probs_bf16 = jax.block_until_ready(
        pt_logreg_forward(x, W, b, cast_inputs_to_bf16=True))
    assert probs_bf16.shape == (N, C)
    assert jnp.allclose(probs_bf16, ref, atol=5e-2, rtol=5e-2)
    assert jnp.allclose(jnp.sum(probs_bf16, axis=1), 1.0, atol=1e-2)

    # K-tiled (contraction-split) path with in-place f32 accumulation.
    N2, D2, C2 = 64, 256, 16
    kx2, kw2, kb2 = jax.random.split(jax.random.PRNGKey(1), 3)
    x2 = jax.random.normal(kx2, (N2, D2), dtype=jnp.float32)
    W2 = jax.random.normal(kw2, (D2, C2), dtype=jnp.float32)
    b2 = jax.random.normal(kb2, (1, C2), dtype=jnp.float32)
    probs2 = jax.block_until_ready(
        pt_logreg_forward(x2, W2, b2, force_k_tiling=True, tile_k=128))
    ref2 = jax.nn.softmax(x2 @ W2 + b2, axis=1)
    assert probs2.shape == (N2, C2)
    assert jnp.allclose(probs2, ref2, atol=1e-4, rtol=1e-4)
    assert jnp.allclose(jnp.sum(probs2, axis=1), 1.0, atol=1e-4)

    # K-tiled path with a narrower-than-f32 output (exercises the f32 scratch
    # accumulator variant).
    probs3 = jax.block_until_ready(
        pt_logreg_forward(x2.astype(jnp.bfloat16), W2, b2,
                          force_k_tiling=True, tile_k=128))
    assert probs3.shape == (N2, C2)
    assert jnp.allclose(jnp.sum(probs3.astype(jnp.float32), axis=1),
                        1.0, atol=2e-2)

    # TODO(synk): get_loss / training loop (cross-entropy + L2) is not part of
    # the forward pass and is left to the JAX wrapper level.
    print("KERNEL_OK")
</pallas_src>

<mosaic_0001>
module attributes {stable_mosaic.version = 11 : i64} {
  func.func @_logreg_kernel(%arg0: i32, %arg1: memref<8x32xf32, #tpu.memory_space<vmem>>, %arg2: memref<32x128xf32, #tpu.memory_space<vmem>>, %arg3: memref<1x128xf32, #tpu.memory_space<vmem>>, %arg4: memref<8x128xf32, #tpu.memory_space<vmem>>) attributes {dimension_semantics = [#tpu.dimension_semantics<parallel>], iteration_bounds = array<i64: 1>, scalar_prefetch = 0 : i64, scratch_operands = 0 : i64, tpu.core_type = #tpu.core_type<tc>, window_params = [{transform_indices = @transform_0, window_bounds = array<i64: 8, 32>}, {pipeline_mode = #tpu.pipeline_mode<synchronous>, transform_indices = @transform_1, window_bounds = array<i64: 32, 128>}, {pipeline_mode = #tpu.pipeline_mode<synchronous>, transform_indices = @transform_2, window_bounds = array<i64: 1, 128>}, {transform_indices = @transform_3, window_bounds = array<i64: 8, 128>}]} {
    %c0 = arith.constant 0 : index
    %c0_0 = arith.constant 0 : index
    %0 = vector.load %arg1[%c0, %c0_0] : memref<8x32xf32, #tpu.memory_space<vmem>>, vector<8x32xf32>
    %c0_1 = arith.constant 0 : index
    %c0_2 = arith.constant 0 : index
    %1 = vector.load %arg2[%c0_1, %c0_2] : memref<32x128xf32, #tpu.memory_space<vmem>>, vector<32x128xf32>
    %cst = arith.constant dense<0.000000e+00> : vector<8x128xf32>
    %2 = tpu.matmul %0, %1, %cst {dimension_numbers = #tpu.dot_dimension_numbers<[1], [0], [0], [1], [0, 0, 1, 1], [], []>} : vector<8x32xf32>, vector<32x128xf32>, vector<8x128xf32> -> vector<8x128xf32>
    %c0_3 = arith.constant 0 : index
    %c0_4 = arith.constant 0 : index
    %3 = vector.load %arg3[%c0_3, %c0_4] : memref<1x128xf32, #tpu.memory_space<vmem>>, vector<1x128xf32>
    %4 = vector.broadcast %3 : vector<1x128xf32> to vector<8x128xf32>
    %5 = arith.addf %2, %4 : vector<8x128xf32>
    %cst_5 = arith.constant dense<0xFF800000> : vector<8xf32>
    %6 = vector.multi_reduction <maximumf>, %5, %cst_5 [1] : vector<8x128xf32> to vector<8xf32>
    %7 = vector.shape_cast %6 : vector<8xf32> to vector<8x1xf32>
    %8 = vector.broadcast %7 : vector<8x1xf32> to vector<8x128xf32>
    %9 = arith.subf %5, %8 : vector<8x128xf32>
    %10 = math.exp %9 : vector<8x128xf32>
    %cst_6 = arith.constant dense<0.000000e+00> : vector<8xf32>
    %11 = vector.multi_reduction <add>, %10, %cst_6 [1] : vector<8x128xf32> to vector<8xf32>
    %12 = vector.shape_cast %11 : vector<8xf32> to vector<8x1xf32>
    %13 = tpu.reciprocal %12 : vector<8x1xf32> -> vector<8x1xf32>
    %14 = vector.broadcast %13 : vector<8x1xf32> to vector<8x128xf32>
    %15 = arith.mulf %10, %14 : vector<8x128xf32>
    %c0_7 = arith.constant 0 : index
    %c0_8 = arith.constant 0 : index
    %16 = vector.load %arg4[%c0_7, %c0_8] : memref<8x128xf32, #tpu.memory_space<vmem>>, vector<8x128xf32>
    tpu.vector_store %arg4[%c0_7, %c0_8], %15 {strides = array<i32>} : memref<8x128xf32, #tpu.memory_space<vmem>>, vector<8x128xf32>,
    return
  }
  func.func @transform_0(%arg0: i32) -> (i32, i32) {
    %c0_i32 = arith.constant 0 : i32
    %c0_i32_0 = arith.constant 0 : i32
    return %arg0, %c0_i32 : i32, i32
  }
  func.func @transform_1(%arg0: i32) -> (i32, i32) {
    %c0_i32 = arith.constant 0 : i32
    %c0_i32_0 = arith.constant 0 : i32
    %c0_i32_1 = arith.constant 0 : i32
    return %c0_i32, %c0_i32_0 : i32, i32
  }
  func.func @transform_2(%arg0: i32) -> (i32, i32) {
    %c0_i32 = arith.constant 0 : i32
    %c0_i32_0 = arith.constant 0 : i32
    %c0_i32_1 = arith.constant 0 : i32
    return %c0_i32, %c0_i32_0 : i32, i32
  }
  func.func @transform_3(%arg0: i32) -> (i32, i32) {
    %c0_i32 = arith.constant 0 : i32
    %c0_i32_0 = arith.constant 0 : i32
    return %arg0, %c0_i32 : i32, i32
  }
}

module attributes {stable_mosaic.version = 11 : i64} {
  func.func @_logreg_kernel(%arg0: i32, %arg1: memref<8x32xf32, #tpu.memory_space<vmem>>, %arg2: memref<32x128xf32, #tpu.memory_space<vmem>>, %arg3: memref<1x128xf32, #tpu.memory_space<vmem>>, %arg4: memref<8x128xf32, #tpu.memory_space<vmem>>) attributes {dimension_semantics = [#tpu.dimension_semantics<parallel>], iteration_bounds = array<i64: 1>, scalar_prefetch = 0 : i64, scratch_operands = 0 : i64, tpu.core_type = #tpu.core_type<tc>, window_params = [{transform_indices = @transform_0, window_bounds = array<i64: 8, 32>}, {pipeline_mode = #tpu.pipeline_mode<synchronous>, transform_indices = @transform_1, window_bounds = array<i64: 32, 128>}, {pipeline_mode = #tpu.pipeline_mode<synchronous>, transform_indices = @transform_2, window_bounds = array<i64: 1, 128>}, {transform_indices = @transform_3, window_bounds = array<i64: 8, 128>}]} {
    %c0 = arith.constant 0 : index
    %c0_0 = arith.constant 0 : index
    %0 = vector.load %arg1[%c0, %c0_0] : memref<8x32xf32, #tpu.memory_space<vmem>>, vector<8x32xf32>
    %c0_1 = arith.constant 0 : index
    %c0_2 = arith.constant 0 : index
    %1 = vector.load %arg2[%c0_1, %c0_2] : memref<32x128xf32, #tpu.memory_space<vmem>>, vector<32x128xf32>
    %cst = arith.constant dense<0.000000e+00> : vector<8x128xf32>
    %2 = tpu.matmul %0, %1, %cst {dimension_numbers = #tpu.dot_dimension_numbers<[1], [0], [0], [1], [0, 0, 1, 1], [], []>} : vector<8x32xf32>, vector<32x128xf32>, vector<8x128xf32> -> vector<8x128xf32>
    %c0_3 = arith.constant 0 : index
    %c0_4 = arith.constant 0 : index
    %3 = vector.load %arg3[%c0_3, %c0_4] : memref<1x128xf32, #tpu.memory_space<vmem>>, vector<1x128xf32>
    %4 = vector.broadcast %3 : vector<1x128xf32> to vector<8x128xf32>
    %5 = arith.addf %2, %4 : vector<8x128xf32>
    %cst_5 = arith.constant dense<0xFF800000> : vector<8xf32>
    %6 = vector.multi_reduction <maximumf>, %5, %cst_5 [1] : vector<8x128xf32> to vector<8xf32>
    %7 = vector.shape_cast %6 : vector<8xf32> to vector<8x1xf32>
    %8 = vector.broadcast %7 : vector<8x1xf32> to vector<8x128xf32>
    %9 = arith.subf %5, %8 : vector<8x128xf32>
    %10 = math.exp %9 : vector<8x128xf32>
    %cst_6 = arith.constant dense<0.000000e+00> : vector<8xf32>
    %11 = vector.multi_reduction <add>, %10, %cst_6 [1] : vector<8x128xf32> to vector<8xf32>
    %12 = vector.shape_cast %11 : vector<8xf32> to vector<8x1xf32>
    %13 = tpu.reciprocal %12 : vector<8x1xf32> -> vector<8x1xf32>
    %14 = vector.broadcast %13 : vector<8x1xf32> to vector<8x128xf32>
    %15 = arith.mulf %10, %14 : vector<8x128xf32>
    %c0_7 = arith.constant 0 : index
    %c0_8 = arith.constant 0 : index
    %16 = vector.load %arg4[%c0_7, %c0_8] : memref<8x128xf32, #tpu.memory_space<vmem>>, vector<8x128xf32>
    tpu.vector_store %arg4[%c0_7, %c0_8], %15 {strides = array<i32>} : memref<8x128xf32, #tpu.memory_space<vmem>>, vector<8x128xf32>,
    return
  }
  func.func @transform_0(%arg0: i32) -> (i32, i32) {
    %c0_i32 = arith.constant 0 : i32
    %c0_i32_0 = arith.constant 0 : i32
    return %arg0, %c0_i32 : i32, i32
  }
  func.func @transform_1(%arg0: i32) -> (i32, i32) {
    %c0_i32 = arith.constant 0 : i32
    %c0_i32_0 = arith.constant 0 : i32
    %c0_i32_1 = arith.constant 0 : i32
    return %c0_i32, %c0_i32_0 : i32, i32
  }
  func.func @transform_2(%arg0: i32) -> (i32, i32) {
    %c0_i32 = arith.constant 0 : i32
    %c0_i32_0 = arith.constant 0 : i32
    %c0_i32_1 = arith.constant 0 : i32
    return %c0_i32, %c0_i32_0 : i32, i32
  }
  func.func @transform_3(%arg0: i32) -> (i32, i32) {
    %c0_i32 = arith.constant 0 : i32
    %c0_i32_0 = arith.constant 0 : i32
    return %arg0, %c0_i32 : i32, i32
  }
}

</mosaic_0001>

<llo_original>
// kernel: tpu_custom_call.1
$region0: #{tpu_custom_call.1}
  #allocation0 [shape = 'u32[]', space=smem, size = 0x4, offset = 0x4, fixed_abs, tag = 'smem constant byte address 0x4 - core index']
  #allocation1 [shape = 'u32[144,128]{1,0:T(1,128)}', space=vmem, size = 0x12000, scoped, tag = 'internal scratch']
  %s0 = inlined_call_operand.hbm [shape: f32[8,32], index: 0, kind: input, shape index: {}]
  %s1 = inlined_call_operand.hbm [shape: f32[32,128], index: 1, kind: input, shape index: {}]
  %s2 = inlined_call_operand.hbm [shape: f32[1,128], index: 2, kind: input, shape index: {}]
  %s3 = inlined_call_operand.hbm [shape: f32[8,128], index: 3, kind: output, shape index: {}]
  %s4 = sld [smem:[#allocation0]]
  $region34: #{tpu_custom_call.1} parent=0
    _
  %s6 = ssub.s32 1, %s4
  %s7 = scalar_select 0, %s6, %s4
  $region1: #{tpu_custom_call.1} parent=0
    #allocation2 [shape = 'u8[4096]{0}', space=vmem, size = 0x1000, scoped, tag = 'input window, operand 0, single buffered']
    #allocation3 [shape = 's32[1]{0}', space=sflag, size = 0x4, scoped, tag = 'scoped memory for tpu_custom_call.1']
    #allocation4 [shape = 's32[1]{0}', space=sflag, size = 0x4, scoped, tag = 'scoped memory for tpu_custom_call.1']
    #allocation5 [shape = 'u8[16384]{0}', space=vmem, size = 0x4000, scoped, tag = 'input window, operand 1, single buffered']
    #allocation6 [shape = 's32[1]{0}', space=sflag, size = 0x4, scoped, tag = 'scoped memory for tpu_custom_call.1']
    #allocation7 [shape = 'u8[512]{0}', space=vmem, size = 0x400, scoped, tag = 'input window, operand 2, single buffered']
    #allocation8 [shape = 'u8[4096]{0}', space=vmem, size = 0x1000, scoped, tag = 'output window, operand 0, single buffered']
    %8 = vsyncpa [#allocation3], 0
    %9 = vsyncpa [#allocation6], 0
    %10 = vsyncpa [#allocation4], 0
    // Predicated region
    $region2: #{tpu_custom_call.1} parent=1 // pred_check
      _
    $region3: #{tpu_custom_call.1} parent=1 // pred_check_branch
      %12 = sbr.rel (0) target = $region5
    $region4: #{tpu_custom_call.1} parent=1 // pred_region
      %s14 = ssub.s32 128, 128
      %15 = vsyncadd [#allocation3], %s14
      %s17 = sshll.u32 [#allocation2], 4
      %s18 = int_to_ptr.vmem [resolvable:$true] %s17
      %20 = dma.hbm_to_vmem [thread:$0]  %s0, 128, %s18, [#allocation3]
    $region5: #{tpu_custom_call.1} parent=1 // pred_fallthru
      _
    // Predicated region
    $region6: #{tpu_custom_call.1} parent=1 // pred_check
      _
    $region7: #{tpu_custom_call.1} parent=1 // pred_check_branch
      %22 = sbr.rel (0) target = $region9
    $region8: #{tpu_custom_call.1} parent=1 // pred_region
      %s24 = ssub.s32 512, 512
      %25 = vsyncadd [#allocation6], %s24
      %s26 = sshll.u32 [#allocation5], 4
      %s27 = int_to_ptr.vmem [resolvable:$true] %s26
      %32 = dma.hbm_to_vmem [thread:$0]  %s1, 512, %s27, [#allocation6], 128, 128, 8
    $region9: #{tpu_custom_call.1} parent=1 // pred_fallthru
      _
    // Predicated region
    $region10: #{tpu_custom_call.1} parent=1 // pred_check
      _
    $region11: #{tpu_custom_call.1} parent=1 // pred_check_branch
      %34 = sbr.rel (0) target = $region13
    $region12: #{tpu_custom_call.1} parent=1 // pred_region
      %s36 = ssub.s32 16, 16
      %37 = vsyncadd [#allocation6], %s36
      %s39 = sshll.u32 [#allocation7], 4
      %s40 = int_to_ptr.vmem [resolvable:$true] %s39
      %42 = dma.hbm_to_vmem [thread:$0]  %s2, 16, %s40, [#allocation6]
    $region13: #{tpu_custom_call.1} parent=1 // pred_fallthru
      _
    // Predicated region
    $region14: #{tpu_custom_call.1} parent=1 // pred_check
      _
    $region15: #{tpu_custom_call.1} parent=1 // pred_check_branch
      %44 = sbr.rel (0) target = $region17
    $region16: #{tpu_custom_call.1} parent=1 // pred_region
      %45 = dma.done [#allocation3], 128
    $region17: #{tpu_custom_call.1} parent=1 // pred_fallthru
      _
    // Predicated region
    $region18: #{tpu_custom_call.1} parent=1 // pred_check
      _
    $region19: #{tpu_custom_call.1} parent=1 // pred_check_branch
      %47 = sbr.rel (0) target = $region21
    $region20: #{tpu_custom_call.1} parent=1 // pred_region
      %48 = dma.done [#allocation6], 512
    $region21: #{tpu_custom_call.1} parent=1 // pred_fallthru
      _
    // Predicated region
    $region22: #{tpu_custom_call.1} parent=1 // pred_check
      _
    $region23: #{tpu_custom_call.1} parent=1 // pred_check_branch
      %50 = sbr.rel (0) target = $region25
    $region24: #{tpu_custom_call.1} parent=1 // pred_region
      %51 = dma.done [#allocation6], 16
    $region25: #{tpu_custom_call.1} parent=1 // pred_fallthru
      _
    %v52 = vld [vmem:[#allocation2] sm:$0xff]
    %v53 = vld [vmem:[#allocation5] sm:$0xff]
    %v54 = vld [vmem:[#allocation5 + $0x8] sm:$0xff]
    %v55 = vld [vmem:[#allocation5 + $0x10] sm:$0xff]
    %v56 = vld [vmem:[#allocation5 + $0x18] sm:$0xff]
    %v57 = vld [vmem:[#allocation7] sm:$0x1]
    %v59 = vlaneseq
    %v60 = vshrl.u32 %v59, 7
    %v61 = vsub.s32 0, %v60
    %v62 = vrot.slane %v57, %v61
    %vm64 = vcmask 261120
    %v66 = vsel %vm64, %v52, 0
    %68 = vmatprep.subr.mxu0 0.0
    %69 = vmatpush1.msra.mxu0 %v53
    %70 = vmatprep.subr.mxu0 0.0
    %71 = vmatpush1.msra.mxu0 %v54
    %72 = vmatprep.subr.mxu0 0.0
    %73 = vmatpush1.msra.mxu0 %v55
    %74 = vmatprep.subr.mxu0 0.0
    %75 = vmatpush1.msra.mxu0 %v56
    %76 = vmatprep.subr.mxu0 0.0
    %77 = vmatpush1.msra.mxu0 0.0
    %78 = vmatprep.subr.mxu0 0.0
    %79 = vmatpush1.msra.mxu0 0.0
    %80 = vmatprep.subr.mxu0 0.0
    %81 = vmatpush1.msra.mxu0 0.0
    %82 = vmatprep.subr.mxu0 0.0
    %83 = vmatpush1.msra.mxu0 0.0
    %84 = vmatprep.subr.mxu0 0.0
    %85 = vmatpush1.msra.mxu0 0.0
    %86 = vmatprep.subr.mxu0 0.0
    %87 = vmatpush1.msra.mxu0 0.0
    %88 = vmatprep.subr.mxu0 0.0
    %89 = vmatpush1.msra.mxu0 0.0
    %90 = vmatprep.subr.mxu0 0.0
    %91 = vmatpush1.msra.mxu0 0.0
    %92 = vmatprep.subr.mxu0 0.0
    %93 = vmatpush1.msra.mxu0 0.0
    %94 = vmatprep.subr.mxu0 0.0
    %95 = vmatpush1.msra.mxu0 0.0
    %96 = vmatprep.subr.mxu0 0.0
    %97 = vmatpush1.msra.mxu0 0.0
    %98 = vmatprep.subr.mxu0 0.0
    %99 = vmatpush1.msra.mxu0 0.0
    %100 = vmatprep.subr.mxu0 0.0
    %101 = vmatpush1.msra.mxu0 0.0
    %102 = vmatprep.subr.mxu0 0.0
    %103 = vmatpush1.msra.mxu0 0.0
    %104 = vmatprep.subr.mxu0 0.0
    %105 = vmatpush1.msra.mxu0 0.0
    %106 = vmatprep.subr.mxu0 0.0
    %107 = vmatpush1.msra.mxu0 0.0
    %108 = vmatprep.subr.mxu0 0.0
    %109 = vmatpush1.msra.mxu0 0.0
    %110 = vmatprep.subr.mxu0 0.0
    %111 = vmatpush1.msra.mxu0 0.0
    %112 = vmatprep.subr.mxu0 0.0
    %113 = vmatpush1.msra.mxu0 0.0
    %114 = vmatprep.subr.mxu0 0.0
    %115 = vmatpush1.msra.mxu0 0.0
    %116 = vmatprep.subr.mxu0 0.0
    %117 = vmatpush1.msra.mxu0 0.0
    %118 = vmatprep.subr.mxu0 0.0
    %119 = vmatpush1.msra.mxu0 0.0
    %120 = vmatprep.subr.mxu0 0.0
    %121 = vmatpush1.msra.mxu0 0.0
    %122 = vmatprep.subr.mxu0 0.0
    %123 = vmatpush1.msra.mxu0 0.0
    %124 = vmatprep.subr.mxu0 0.0
    %125 = vmatpush1.msra.mxu0 0.0
    %126 = vmatprep.subr.mxu0 0.0
    %127 = vmatpush1.msra.mxu0 0.0
    %128 = vmatprep.subr.mxu0 0.0
    %129 = vmatpush1.msra.mxu0 0.0
    %130 = vmatprep.subr.mxu0 0.0
    %131 = vmatpush1.msra.mxu0 0.0
    %132 = vmatprep.mubr.f32.mxu0 0.0
    %133 = vmatmul.mubr.f32.gmra.mrb[0].mxu0 %v66
    %v134 = vpop.f32.mrb[0].mxu0
    %v135 = vadd.f32 %v62, %v134
    %v136 = vpop.f32.mrb[0].mxu0
    %137 = vdwg.mxu0
    %138 = vmax.xlane.f32.xlu0 %v135
    %v139 = vpop.xlane.xlu0 %138
    %v140 = vsub.f32 %v135, %v139
    %v141 = vmul.f32 %v140, 1.442695
    %v142 = vpow.pop %v141
    %143 = vadd.xlane.f32.xlu0 %v142
    %v144 = vpop.xlane.xlu0 %143
    %v145 = vrcp.pop %v144
    %v146 = vmul.f32 %v142, %v145
    %147 = vst [vmem:[#allocation8] sm:$0xff] %v146
    // Predicated region
    $region26: #{tpu_custom_call.1} parent=1 // pred_check
      _
    $region27: #{tpu_custom_call.1} parent=1 // pred_check_branch
      %149 = sbr.rel (0) target = $region29
    $region28: #{tpu_custom_call.1} parent=1 // pred_region
      %s151 = ssub.s32 128, 128
      %152 = vsyncadd [#allocation4], %s151
      %s154 = sshll.u32 [#allocation8], 4
      %s155 = int_to_ptr.vmem [resolvable:$true] %s154
      %157 = dma.vmem_to_hbm [thread:$0]  %s155, 128, %s3, [#allocation4]
    $region29: #{tpu_custom_call.1} parent=1 // pred_fallthru
      _
    // Predicated region
    $region30: #{tpu_custom_call.1} parent=1 // pred_check
      _
    $region31: #{tpu_custom_call.1} parent=1 // pred_check_branch
      %159 = sbr.rel (0) target = $region33
    $region32: #{tpu_custom_call.1} parent=1 // pred_region
      %160 = dma.done [#allocation4], 128
    $region33: #{tpu_custom_call.1} parent=1 // pred_fallthru
      _
    %161 = vsyncpa [#allocation3], 1
    %162 = vsyncpa [#allocation6], 1
    %163 = vsyncpa [#allocation4], 1

// kernel: tpu_custom_call.1
$region0: #{tpu_custom_call.1}
  #allocation0 [shape = 'u32[]', space=smem, size = 0x4, offset = 0x4, fixed_abs, tag = 'smem constant byte address 0x4 - core index']
  #allocation1 [shape = 'u32[144,128]{1,0:T(1,128)}', space=vmem, size = 0x12000, scoped, tag = 'internal scratch']
  %s0 = inlined_call_operand.hbm [shape: f32[8,32], index: 0, kind: input, shape index: {}]
  %s1 = inlined_call_operand.hbm [shape: f32[32,128], index: 1, kind: input, shape index: {}]
  %s2 = inlined_call_operand.hbm [shape: f32[1,128], index: 2, kind: input, shape index: {}]
  %s3 = inlined_call_operand.hbm [shape: f32[8,128], index: 3, kind: output, shape index: {}]
  %s4 = sld [smem:[#allocation0]]
  $region34: #{tpu_custom_call.1} parent=0
    _
  %s6 = ssub.s32 1, %s4
  %s7 = scalar_select 0, %s6, %s4
  $region1: #{tpu_custom_call.1} parent=0
    #allocation2 [shape = 'u8[4096]{0}', space=vmem, size = 0x1000, scoped, tag = 'input window, operand 0, single buffered']
    #allocation3 [shape = 's32[1]{0}', space=sflag, size = 0x4, scoped, tag = 'scoped memory for tpu_custom_call.1']
    #allocation4 [shape = 's32[1]{0}', space=sflag, size = 0x4, scoped, tag = 'scoped memory for tpu_custom_call.1']
    #allocation5 [shape = 'u8[16384]{0}', space=vmem, size = 0x4000, scoped, tag = 'input window, operand 1, single buffered']
    #allocation6 [shape = 's32[1]{0}', space=sflag, size = 0x4, scoped, tag = 'scoped memory for tpu_custom_call.1']
    #allocation7 [shape = 'u8[512]{0}', space=vmem, size = 0x400, scoped, tag = 'input window, operand 2, single buffered']
    #allocation8 [shape = 'u8[4096]{0}', space=vmem, size = 0x1000, scoped, tag = 'output window, operand 0, single buffered']
    %8 = vsyncpa [#allocation3], 0
    %9 = vsyncpa [#allocation6], 0
    %10 = vsyncpa [#allocation4], 0
    // Predicated region
    $region2: #{tpu_custom_call.1} parent=1 // pred_check
      _
    $region3: #{tpu_custom_call.1} parent=1 // pred_check_branch
      %12 = sbr.rel (0) target = $region5
    $region4: #{tpu_custom_call.1} parent=1 // pred_region
      %s14 = ssub.s32 128, 128
      %15 = vsyncadd [#allocation3], %s14
      %s17 = sshll.u32 [#allocation2], 4
      %s18 = int_to_ptr.vmem [resolvable:$true] %s17
      %20 = dma.hbm_to_vmem [thread:$0]  %s0, 128, %s18, [#allocation3]
    $region5: #{tpu_custom_call.1} parent=1 // pred_fallthru
      _
    // Predicated region
    $region6: #{tpu_custom_call.1} parent=1 // pred_check
      _
    $region7: #{tpu_custom_call.1} parent=1 // pred_check_branch
      %22 = sbr.rel (0) target = $region9
    $region8: #{tpu_custom_call.1} parent=1 // pred_region
      %s24 = ssub.s32 512, 512
      %25 = vsyncadd [#allocation6], %s24
      %s26 = sshll.u32 [#allocation5], 4
      %s27 = int_to_ptr.vmem [resolvable:$true] %s26
      %32 = dma.hbm_to_vmem [thread:$0]  %s1, 512, %s27, [#allocation6], 128, 128, 8
    $region9: #{tpu_custom_call.1} parent=1 // pred_fallthru
      _
    // Predicated region
    $region10: #{tpu_custom_call.1} parent=1 // pred_check
      _
    $region11: #{tpu_custom_call.1} parent=1 // pred_check_branch
      %34 = sbr.rel (0) target = $region13
    $region12: #{tpu_custom_call.1} parent=1 // pred_region
      %s36 = ssub.s32 16, 16
      %37 = vsyncadd [#allocation6], %s36
      %s39 = sshll.u32 [#allocation7], 4
      %s40 = int_to_ptr.vmem [resolvable:$true] %s39
      %42 = dma.hbm_to_vmem [thread:$0]  %s2, 16, %s40, [#allocation6]
    $region13: #{tpu_custom_call.1} parent=1 // pred_fallthru
      _
    // Predicated region
    $region14: #{tpu_custom_call.1} parent=1 // pred_check
      _
    $region15: #{tpu_custom_call.1} parent=1 // pred_check_branch
      %44 = sbr.rel (0) target = $region17
    $region16: #{tpu_custom_call.1} parent=1 // pred_region
      %45 = dma.done [#allocation3], 128
    $region17: #{tpu_custom_call.1} parent=1 // pred_fallthru
      _
    // Predicated region
    $region18: #{tpu_custom_call.1} parent=1 // pred_check
      _
    $region19: #{tpu_custom_call.1} parent=1 // pred_check_branch
      %47 = sbr.rel (0) target = $region21
    $region20: #{tpu_custom_call.1} parent=1 // pred_region
      %48 = dma.done [#allocation6], 512
    $region21: #{tpu_custom_call.1} parent=1 // pred_fallthru
      _
    // Predicated region
    $region22: #{tpu_custom_call.1} parent=1 // pred_check
      _
    $region23: #{tpu_custom_call.1} parent=1 // pred_check_branch
      %50 = sbr.rel (0) target = $region25
    $region24: #{tpu_custom_call.1} parent=1 // pred_region
      %51 = dma.done [#allocation6], 16
    $region25: #{tpu_custom_call.1} parent=1 // pred_fallthru
      _
    %v52 = vld [vmem:[#allocation2] sm:$0xff]
    %v53 = vld [vmem:[#allocation5] sm:$0xff]
    %v54 = vld [vmem:[#allocation5 + $0x8] sm:$0xff]
    %v55 = vld [vmem:[#allocation5 + $0x10] sm:$0xff]
    %v56 = vld [vmem:[#allocation5 + $0x18] sm:$0xff]
    %v57 = vld [vmem:[#allocation7] sm:$0x1]
    %v59 = vlaneseq
    %v60 = vshrl.u32 %v59, 7
    %v61 = vsub.s32 0, %v60
    %v62 = vrot.slane %v57, %v61
    %vm64 = vcmask 261120
    %v66 = vsel %vm64, %v52, 0
    %68 = vmatprep.subr.mxu0 0.0
    %69 = vmatpush1.msra.mxu0 %v53
    %70 = vmatprep.subr.mxu0 0.0
    %71 = vmatpush1.msra.mxu0 %v54
    %72 = vmatprep.subr.mxu0 0.0
    %73 = vmatpush1.msra.mxu0 %v55
    %74 = vmatprep.subr.mxu0 0.0
    %75 = vmatpush1.msra.mxu0 %v56
    %76 = vmatprep.subr.mxu0 0.0
    %77 = vmatpush1.msra.mxu0 0.0
    %78 = vmatprep.subr.mxu0 0.0
    %79 = vmatpush1.msra.mxu0 0.0
    %80 = vmatprep.subr.mxu0 0.0
    %81 = vmatpush1.msra.mxu0 0.0
    %82 = vmatprep.subr.mxu0 0.0
    %83 = vmatpush1.msra.mxu0 0.0
    %84 = vmatprep.subr.mxu0 0.0
    %85 = vmatpush1.msra.mxu0 0.0
    %86 = vmatprep.subr.mxu0 0.0
    %87 = vmatpush1.msra.mxu0 0.0
    %88 = vmatprep.subr.mxu0 0.0
    %89 = vmatpush1.msra.mxu0 0.0
    %90 = vmatprep.subr.mxu0 0.0
    %91 = vmatpush1.msra.mxu0 0.0
    %92 = vmatprep.subr.mxu0 0.0
    %93 = vmatpush1.msra.mxu0 0.0
    %94 = vmatprep.subr.mxu0 0.0
    %95 = vmatpush1.msra.mxu0 0.0
    %96 = vmatprep.subr.mxu0 0.0
    %97 = vmatpush1.msra.mxu0 0.0
    %98 = vmatprep.subr.mxu0 0.0
    %99 = vmatpush1.msra.mxu0 0.0
    %100 = vmatprep.subr.mxu0 0.0
    %101 = vmatpush1.msra.mxu0 0.0
    %102 = vmatprep.subr.mxu0 0.0
    %103 = vmatpush1.msra.mxu0 0.0
    %104 = vmatprep.subr.mxu0 0.0
    %105 = vmatpush1.msra.mxu0 0.0
    %106 = vmatprep.subr.mxu0 0.0
    %107 = vmatpush1.msra.mxu0 0.0
    %108 = vmatprep.subr.mxu0 0.0
    %109 = vmatpush1.msra.mxu0 0.0
    %110 = vmatprep.subr.mxu0 0.0
    %111 = vmatpush1.msra.mxu0 0.0
    %112 = vmatprep.subr.mxu0 0.0
    %113 = vmatpush1.msra.mxu0 0.0
    %114 = vmatprep.subr.mxu0 0.0
    %115 = vmatpush1.msra.mxu0 0.0
    %116 = vmatprep.subr.mxu0 0.0
    %117 = vmatpush1.msra.mxu0 0.0
    %118 = vmatprep.subr.mxu0 0.0
    %119 = vmatpush1.msra.mxu0 0.0
    %120 = vmatprep.subr.mxu0 0.0
    %121 = vmatpush1.msra.mxu0 0.0
    %122 = vmatprep.subr.mxu0 0.0
    %123 = vmatpush1.msra.mxu0 0.0
    %124 = vmatprep.subr.mxu0 0.0
    %125 = vmatpush1.msra.mxu0 0.0
    %126 = vmatprep.subr.mxu0 0.0
    %127 = vmatpush1.msra.mxu0 0.0
    %128 = vmatprep.subr.mxu0 0.0
    %129 = vmatpush1.msra.mxu0 0.0
    %130 = vmatprep.subr.mxu0 0.0
    %131 = vmatpush1.msra.mxu0 0.0
    %132 = vmatprep.mubr.f32.mxu0 0.0
    %133 = vmatmul.mubr.f32.gmra.mrb[0].mxu0 %v66
    %v134 = vpop.f32.mrb[0].mxu0
    %v135 = vadd.f32 %v62, %v134
    %v136 = vpop.f32.mrb[0].mxu0
    %137 = vdwg.mxu0
    %138 = vmax.xlane.f32.xlu0 %v135
    %v139 = vpop.xlane.xlu0 %138
    %v140 = vsub.f32 %v135, %v139
    %v141 = vmul.f32 %v140, 1.442695
    %v142 = vpow.pop %v141
    %143 = vadd.xlane.f32.xlu0 %v142
    %v144 = vpop.xlane.xlu0 %143
    %v145 = vrcp.pop %v144
    %v146 = vmul.f32 %v142, %v145
    %147 = vst [vmem:[#allocation8] sm:$0xff] %v146
    // Predicated region
    $region26: #{tpu_custom_call.1} parent=1 // pred_check
      _
    $region27: #{tpu_custom_call.1} parent=1 // pred_check_branch
      %149 = sbr.rel (0) target = $region29
    $region28: #{tpu_custom_call.1} parent=1 // pred_region
      %s151 = ssub.s32 128, 128
      %152 = vsyncadd [#allocation4], %s151
      %s154 = sshll.u32 [#allocation8], 4
      %s155 = int_to_ptr.vmem [resolvable:$true] %s154
      %157 = dma.vmem_to_hbm [thread:$0]  %s155, 128, %s3, [#allocation4]
    $region29: #{tpu_custom_call.1} parent=1 // pred_fallthru
      _
    // Predicated region
    $region30: #{tpu_custom_call.1} parent=1 // pred_check
      _
    $region31: #{tpu_custom_call.1} parent=1 // pred_check_branch
      %159 = sbr.rel (0) target = $region33
    $region32: #{tpu_custom_call.1} parent=1 // pred_region
      %160 = dma.done [#allocation4], 128
    $region33: #{tpu_custom_call.1} parent=1 // pred_fallthru
      _
    %161 = vsyncpa [#allocation3], 1
    %162 = vsyncpa [#allocation6], 1
    %163 = vsyncpa [#allocation4], 1

</llo_original>
